<compile_context>
chip_gen: v5e
topology: v5e:2x2
jax: 0.10.0
libtpu: 0.0.40
codegen_flags: <defaults>
</compile_context>

<pallas_src>
import math

import jax
import jax.numpy as jnp
from jax.experimental import pallas as pl
from jax.experimental.pallas import tpu as pltpu

LANE = 128               # vreg lane width: every feature dim padded to a multiple of this
SUBLANE = 8              # vreg sublane width: batch tiles are multiples of this
SPLIT_THRESHOLD = 1024   # batches >= this always get >=2 tiles (v7x megacore sharding)
VMEM_CAP = 48 << 20      # safe on v7x (64 MiB physical per TC); plenty on v5e/v6e (128 MiB)


def _round_up(x, m):
    return ((x + m - 1) // m) * m


def _cdiv(a, b):
    return -(-a // b)


def _pad2(x, rows, cols):
    return jnp.pad(x, ((0, rows - x.shape[0]), (0, cols - x.shape[1])))


def mlp1stage_kernel(a_ref, w1_ref, b1_ref, w2_ref, b2_ref,
                     w3_ref, b3_ref, w5_ref, b5_ref,
                     out_ref, h3_ref):
    # Hot path: 4 MXU matmuls (bf16 in, f32 accumulate) + VPU bias-add / ReLU in f32.
    x = a_ref[...]                                                     # bf16 (tm, K1)
    h1 = jnp.maximum(
        jnp.dot(x, w1_ref[...], preferred_element_type=jnp.float32) + b1_ref[...], 0.0)
    h2 = jnp.maximum(
        jnp.dot(h1.astype(jnp.bfloat16), w2_ref[...],
                preferred_element_type=jnp.float32) + b2_ref[...], 0.0)
    h3 = jnp.maximum(
        jnp.dot(h2.astype(jnp.bfloat16), w3_ref[...],
                preferred_element_type=jnp.float32) + b3_ref[...], 0.0)
    h3_bf = h3.astype(jnp.bfloat16)            # single cast: reused by fc5 matmul + store
    out = jnp.dot(h3_bf, w5_ref[...], preferred_element_type=jnp.float32) + b5_ref[...]
    out_ref[...] = out.astype(out_ref.dtype)   # bf16 writeback (halves output HBM bytes)
    h3_ref[...] = h3_bf


def prepare_mlp1stage_params(params):
    """Pad (to 128-lane multiples) and bf16-cast weights ONCE, outside the hot path.
    Zero padding is numerics-safe: padded rows/cols and bias entries are 0, ReLU(0)=0."""
    (w1, b1), (w2, b2), (w3, b3), (w5, b5) = params
    in_dim, h1_dim = w1.shape
    h2_dim, h3_dim, out_dim = w2.shape[1], w3.shape[1], w5.shape[1]
    K1, N1, N2, N3, NO = (_round_up(d, LANE)
                          for d in (in_dim, h1_dim, h2_dim, h3_dim, out_dim))
    return {
        "w1": _pad2(w1, K1, N1).astype(jnp.bfloat16),
        "b1": _pad2(b1, 1, N1).astype(jnp.float32),
        "w2": _pad2(w2, N1, N2).astype(jnp.bfloat16),
        "b2": _pad2(b2, 1, N2).astype(jnp.float32),
        "w3": _pad2(w3, N2, N3).astype(jnp.bfloat16),
        "b3": _pad2(b3, 1, N3).astype(jnp.float32),
        "w5": _pad2(w5, N3, NO).astype(jnp.bfloat16),
        "b5": _pad2(b5, 1, NO).astype(jnp.float32),
        "dims": (in_dim, h1_dim, h2_dim, h3_dim, out_dim),
        "padded": (K1, N1, N2, N3, NO),
    }


def mlp1stage_forward(A, prep, *, batch_tile=2048):
    """Fused MLP1stage forward. Returns (out, x) in f32, matching the PyTorch module."""
    in_dim, h1_dim, h2_dim, h3_dim, out_dim = prep["dims"]
    K1, N1, N2, N3, NO = prep["padded"]
    B = A.shape[0]
    assert A.shape[1] == in_dim

    # ---- batch tiling: large tiles (amortize ~0.35us/step), >=2 tiles on big batches ----
    n_tiles = max(1, _cdiv(B, batch_tile))
    if n_tiles == 1 and B >= SPLIT_THRESHOLD:
        n_tiles = 2                       # let v7x's second TensorCore get work
    tm = _round_up(_cdiv(B, n_tiles), SUBLANE)

    # ---- VMEM budget from actual footprints (streamed blocks are double-buffered;
    #      h1/h2/h3 intermediates + their bf16 copies are compiler-materialized) ----
    bf2, f4 = 2, 4
    resident_bytes = 2 * ((K1 * N1 + N1 * N2 + N2 * N3 + N3 * NO) * bf2
                          + (N1 + N2 + N3 + NO) * f4)

    def tile_bytes(t):
        stream = 2 * t * (K1 + NO + N3) * bf2                         # in + 2 out blocks
        interm = t * (N1 + N2 + N3) * (f4 + bf2) + t * NO * f4        # h1/h2/h3 (+bf16), out
        return stream + interm

    headroom = 8 << 20                                                # MXU / internal scratch
    while tile_bytes(tm) + resident_bytes + headroom > VMEM_CAP and tm > SUBLANE:
        tm = _round_up(tm // 2, SUBLANE)                              # shrink to fit (v7x)

    Bp = _round_up(B, tm)
    n_tiles = Bp // tm
    vmem_budget = min(VMEM_CAP, tile_bytes(tm) + resident_bytes + headroom)

    # ---- activation pad + bf16 cast: the only per-call host-side prep ----
    A_p = _pad2(A, Bp, K1).astype(jnp.bfloat16)

    # ---- cost estimate so XLA can schedule around the (small) custom call ----
    flops = 2 * Bp * (K1 * N1 + N1 * N2 + N2 * N3 + N3 * NO)
    bytes_accessed = (Bp * K1 * bf2
                      + (K1 * N1 + N1 * N2 + N2 * N3 + N3 * NO) * bf2
                      + (N1 + N2 + N3 + NO) * f4
                      + Bp * (NO + N3) * bf2)
    cost = pl.CostEstimate(flops=flops, transcendentals=0, bytes_accessed=bytes_accessed)

    # Activations/outputs tiled over batch; weights/biases resident (constant index_map).
    # Residents keep default double-buffering (~260 KiB total, counted in the budget).
    act_spec = lambda cols: pl.BlockSpec((tm, cols), lambda i: (i, 0))
    res_spec = lambda shape: pl.BlockSpec(shape, lambda i: (0, 0))

    out_p, h3_p = pl.pallas_call(
        mlp1stage_kernel,
        out_shape=(
            jax.ShapeDtypeStruct((Bp, NO), jnp.bfloat16),
            jax.ShapeDtypeStruct((Bp, N3), jnp.bfloat16),
        ),
        grid=(n_tiles,),
        in_specs=[
            act_spec(K1),
            res_spec(prep["w1"].shape), res_spec(prep["b1"].shape),
            res_spec(prep["w2"].shape), res_spec(prep["b2"].shape),
            res_spec(prep["w3"].shape), res_spec(prep["b3"].shape),
            res_spec(prep["w5"].shape), res_spec(prep["b5"].shape),
        ],
        out_specs=(
            act_spec(NO),
            act_spec(N3),
        ),
        compiler_params=pltpu.CompilerParams(
            dimension_semantics=("parallel",),
            vmem_limit_bytes=int(vmem_budget),
        ),
        cost_estimate=cost,
    )(A_p, prep["w1"], prep["b1"], prep["w2"], prep["b2"],
      prep["w3"], prep["b3"], prep["w5"], prep["b5"])

    # Slice away padding; upcast to f32 to match the PyTorch module's output dtype.
    out = out_p[:B, :out_dim].astype(jnp.float32)
    x_hidden = h3_p[:B, :h3_dim].astype(jnp.float32)
    return out, x_hidden


def init_linear(key, in_dim, out_dim):
    """Deterministic init mimicking PyTorch nn.Linear default (uniform +-1/sqrt(fan_in)).
    Weight stored transposed: (in_dim, out_dim). Bias stored as (1, out_dim)."""
    kw, kb = jax.random.split(key)
    bound = 1.0 / math.sqrt(in_dim)
    w = jax.random.uniform(kw, (in_dim, out_dim), jnp.float32, -bound, bound)
    b = jax.random.uniform(kb, (1, out_dim), jnp.float32, -bound, bound)
    return w, b


def _ref_forward_bf16(A, params):
    """Pure-JAX reference with the kernel's exact precision policy
    (bf16 inputs, f32 accumulate, bf16 output writeback)."""
    (w1, b1), (w2, b2), (w3, b3), (w5, b5) = params
    bf = jnp.bfloat16
    h1 = jnp.maximum(jnp.dot(A.astype(bf), w1.astype(bf),
                             preferred_element_type=jnp.float32) + b1, 0.0)
    h2 = jnp.maximum(jnp.dot(h1.astype(bf), w2.astype(bf),
                             preferred_element_type=jnp.float32) + b2, 0.0)
    h3 = jnp.maximum(jnp.dot(h2.astype(bf), w3.astype(bf),
                             preferred_element_type=jnp.float32) + b3, 0.0)
    out = jnp.dot(h3.astype(bf), w5.astype(bf),
                  preferred_element_type=jnp.float32) + b5
    return out.astype(bf).astype(jnp.float32), h3.astype(bf).astype(jnp.float32)


if __name__ == "__main__":
    # Small shapes consistent with the module's forward.
    batch = 8
    input_dim, hidden_dim1, hidden_dim2, hidden_dim3, output_dim1 = 32, 64, 48, 64, 16

    key = jax.random.PRNGKey(0)
    k_in, k1, k2, k3, k5 = jax.random.split(key, 5)

    A = jax.random.normal(k_in, (batch, input_dim), jnp.float32)
    params = (
        init_linear(k1, input_dim, hidden_dim1),
        init_linear(k2, hidden_dim1, hidden_dim2),
        init_linear(k3, hidden_dim2, hidden_dim3),
        init_linear(k5, hidden_dim3, output_dim1),
    )
    prep = prepare_mlp1stage_params(params)   # pad + bf16-cast once, outside the hot path

    out, x_hidden = mlp1stage_forward(A, prep)
    jax.block_until_ready((out, x_hidden))
    assert out.shape == (batch, output_dim1) and x_hidden.shape == (batch, hidden_dim3)

    # Reference with the identical bf16 policy (tolerance ~1 bf16 ulp).
    ref_out, ref_h3 = _ref_forward_bf16(A, params)
    assert jnp.allclose(out, ref_out, atol=1e-2, rtol=2e-2)
    assert jnp.allclose(x_hidden, ref_h3, atol=1e-2, rtol=2e-2)

    # Full-f32 reference (module semantics) with bf16-appropriate tolerance.
    (w1, b1), (w2, b2), (w3, b3), (w5, b5) = params
    h1 = jnp.maximum(A @ w1 + b1, 0.0)
    h2 = jnp.maximum(h1 @ w2 + b2, 0.0)
    h3 = jnp.maximum(h2 @ w3 + b3, 0.0)
    f32_out = h3 @ w5 + b5
    assert jnp.allclose(out, f32_out, atol=5e-2, rtol=5e-2)
    assert jnp.allclose(x_hidden, h3, atol=5e-2, rtol=5e-2)

    # Larger batch: exercises the >=2-tile split path (v7x megacore) and batch padding.
    batch2 = 1056
    A2 = jax.random.normal(jax.random.PRNGKey(1), (batch2, input_dim), jnp.float32)
    out2, x2 = mlp1stage_forward(A2, prep)
    jax.block_until_ready((out2, x2))
    ref_out2, ref_h32 = _ref_forward_bf16(A2, params)
    assert out2.shape == (batch2, output_dim1) and x2.shape == (batch2, hidden_dim3)
    assert jnp.allclose(out2, ref_out2, atol=1e-2, rtol=2e-2)
    assert jnp.allclose(x2, ref_h32, atol=1e-2, rtol=2e-2)

    print("KERNEL_OK")
</pallas_src>

<mosaic_0001>
module attributes {stable_mosaic.version = 11 : i64} {
  func.func @mlp1stage_kernel(%arg0: i32, %arg1: memref<8x128xbf16, #tpu.memory_space<vmem>>, %arg2: memref<128x128xbf16, #tpu.memory_space<vmem>>, %arg3: memref<1x128xf32, #tpu.memory_space<vmem>>, %arg4: memref<128x128xbf16, #tpu.memory_space<vmem>>, %arg5: memref<1x128xf32, #tpu.memory_space<vmem>>, %arg6: memref<128x128xbf16, #tpu.memory_space<vmem>>, %arg7: memref<1x128xf32, #tpu.memory_space<vmem>>, %arg8: memref<128x128xbf16, #tpu.memory_space<vmem>>, %arg9: memref<1x128xf32, #tpu.memory_space<vmem>>, %arg10: memref<8x128xbf16, #tpu.memory_space<vmem>>, %arg11: memref<8x128xbf16, #tpu.memory_space<vmem>>) attributes {dimension_semantics = [#tpu.dimension_semantics<parallel>], iteration_bounds = array<i64: 1>, scalar_prefetch = 0 : i64, scratch_operands = 0 : i64, tpu.core_type = #tpu.core_type<tc>, window_params = [{transform_indices = @transform_0, window_bounds = array<i64: 8, 128>}, {pipeline_mode = #tpu.pipeline_mode<synchronous>, transform_indices = @transform_1, window_bounds = array<i64: 128, 128>}, {pipeline_mode = #tpu.pipeline_mode<synchronous>, transform_indices = @transform_2, window_bounds = array<i64: 1, 128>}, {pipeline_mode = #tpu.pipeline_mode<synchronous>, transform_indices = @transform_3, window_bounds = array<i64: 128, 128>}, {pipeline_mode = #tpu.pipeline_mode<synchronous>, transform_indices = @transform_4, window_bounds = array<i64: 1, 128>}, {pipeline_mode = #tpu.pipeline_mode<synchronous>, transform_indices = @transform_5, window_bounds = array<i64: 128, 128>}, {pipeline_mode = #tpu.pipeline_mode<synchronous>, transform_indices = @transform_6, window_bounds = array<i64: 1, 128>}, {pipeline_mode = #tpu.pipeline_mode<synchronous>, transform_indices = @transform_7, window_bounds = array<i64: 128, 128>}, {pipeline_mode = #tpu.pipeline_mode<synchronous>, transform_indices = @transform_8, window_bounds = array<i64: 1, 128>}, {transform_indices = @transform_9, window_bounds = array<i64: 8, 128>}, {transform_indices = @transform_10, window_bounds = array<i64: 8, 128>}]} {
    %c0 = arith.constant 0 : index
    %c0_0 = arith.constant 0 : index
    %0 = vector.load %arg1[%c0, %c0_0] : memref<8x128xbf16, #tpu.memory_space<vmem>>, vector<8x128xbf16>
    %c0_1 = arith.constant 0 : index
    %c0_2 = arith.constant 0 : index
    %1 = vector.load %arg2[%c0_1, %c0_2] : memref<128x128xbf16, #tpu.memory_space<vmem>>, vector<128x128xbf16>
    %cst = arith.constant dense<0.000000e+00> : vector<8x128xf32>
    %2 = tpu.matmul %0, %1, %cst {dimension_numbers = #tpu.dot_dimension_numbers<[1], [0], [0], [1], [0, 0, 1, 1], [], []>} : vector<8x128xbf16>, vector<128x128xbf16>, vector<8x128xf32> -> vector<8x128xf32>
    %c0_3 = arith.constant 0 : index
    %c0_4 = arith.constant 0 : index
    %3 = vector.load %arg3[%c0_3, %c0_4] : memref<1x128xf32, #tpu.memory_space<vmem>>, vector<1x128xf32>
    %4 = vector.broadcast %3 : vector<1x128xf32> to vector<8x128xf32>
    %5 = arith.addf %2, %4 : vector<8x128xf32>
    %cst_5 = arith.constant 0.000000e+00 : f32
    %6 = vector.broadcast %cst_5 : f32 to vector<8x128xf32>
    %7 = arith.maximumf %5, %6 : vector<8x128xf32>
    %8 = arith.truncf %7 : vector<8x128xf32> to vector<8x128xbf16>
    %c0_6 = arith.constant 0 : index
    %c0_7 = arith.constant 0 : index
    %9 = vector.load %arg4[%c0_6, %c0_7] : memref<128x128xbf16, #tpu.memory_space<vmem>>, vector<128x128xbf16>
    %cst_8 = arith.constant dense<0.000000e+00> : vector<8x128xf32>
    %10 = tpu.matmul %8, %9, %cst_8 {dimension_numbers = #tpu.dot_dimension_numbers<[1], [0], [0], [1], [0, 0, 1, 1], [], []>} : vector<8x128xbf16>, vector<128x128xbf16>, vector<8x128xf32> -> vector<8x128xf32>
    %c0_9 = arith.constant 0 : index
    %c0_10 = arith.constant 0 : index
    %11 = vector.load %arg5[%c0_9, %c0_10] : memref<1x128xf32, #tpu.memory_space<vmem>>, vector<1x128xf32>
    %12 = vector.broadcast %11 : vector<1x128xf32> to vector<8x128xf32>
    %13 = arith.addf %10, %12 : vector<8x128xf32>
    %cst_11 = arith.constant 0.000000e+00 : f32
    %14 = vector.broadcast %cst_11 : f32 to vector<8x128xf32>
    %15 = arith.maximumf %13, %14 : vector<8x128xf32>
    %16 = arith.truncf %15 : vector<8x128xf32> to vector<8x128xbf16>
    %c0_12 = arith.constant 0 : index
    %c0_13 = arith.constant 0 : index
    %17 = vector.load %arg6[%c0_12, %c0_13] : memref<128x128xbf16, #tpu.memory_space<vmem>>, vector<128x128xbf16>
    %cst_14 = arith.constant dense<0.000000e+00> : vector<8x128xf32>
    %18 = tpu.matmul %16, %17, %cst_14 {dimension_numbers = #tpu.dot_dimension_numbers<[1], [0], [0], [1], [0, 0, 1, 1], [], []>} : vector<8x128xbf16>, vector<128x128xbf16>, vector<8x128xf32> -> vector<8x128xf32>
    %c0_15 = arith.constant 0 : index
    %c0_16 = arith.constant 0 : index
    %19 = vector.load %arg7[%c0_15, %c0_16] : memref<1x128xf32, #tpu.memory_space<vmem>>, vector<1x128xf32>
    %20 = vector.broadcast %19 : vector<1x128xf32> to vector<8x128xf32>
    %21 = arith.addf %18, %20 : vector<8x128xf32>
    %cst_17 = arith.constant 0.000000e+00 : f32
    %22 = vector.broadcast %cst_17 : f32 to vector<8x128xf32>
    %23 = arith.maximumf %21, %22 : vector<8x128xf32>
    %24 = arith.truncf %23 : vector<8x128xf32> to vector<8x128xbf16>
    %c0_18 = arith.constant 0 : index
    %c0_19 = arith.constant 0 : index
    %25 = vector.load %arg8[%c0_18, %c0_19] : memref<128x128xbf16, #tpu.memory_space<vmem>>, vector<128x128xbf16>
    %cst_20 = arith.constant dense<0.000000e+00> : vector<8x128xf32>
    %26 = tpu.matmul %24, %25, %cst_20 {dimension_numbers = #tpu.dot_dimension_numbers<[1], [0], [0], [1], [0, 0, 1, 1], [], []>} : vector<8x128xbf16>, vector<128x128xbf16>, vector<8x128xf32> -> vector<8x128xf32>
    %c0_21 = arith.constant 0 : index
    %c0_22 = arith.constant 0 : index
    %27 = vector.load %arg9[%c0_21, %c0_22] : memref<1x128xf32, #tpu.memory_space<vmem>>, vector<1x128xf32>
    %28 = vector.broadcast %27 : vector<1x128xf32> to vector<8x128xf32>
    %29 = arith.addf %26, %28 : vector<8x128xf32>
    %30 = arith.truncf %29 : vector<8x128xf32> to vector<8x128xbf16>
    %c0_23 = arith.constant 0 : index
    %c0_24 = arith.constant 0 : index
    %31 = vector.load %arg10[%c0_23, %c0_24] : memref<8x128xbf16, #tpu.memory_space<vmem>>, vector<8x128xbf16>
    tpu.vector_store %arg10[%c0_23, %c0_24], %30 {strides = array<i32>} : memref<8x128xbf16, #tpu.memory_space<vmem>>, vector<8x128xbf16>,
    %c0_25 = arith.constant 0 : index
    %c0_26 = arith.constant 0 : index
    %32 = vector.load %arg11[%c0_25, %c0_26] : memref<8x128xbf16, #tpu.memory_space<vmem>>, vector<8x128xbf16>
    tpu.vector_store %arg11[%c0_25, %c0_26], %24 {strides = array<i32>} : memref<8x128xbf16, #tpu.memory_space<vmem>>, vector<8x128xbf16>,
    return
  }
  func.func @transform_0(%arg0: i32) -> (i32, i32) {
    %c0_i32 = arith.constant 0 : i32
    %c0_i32_0 = arith.constant 0 : i32
    return %arg0, %c0_i32 : i32, i32
  }
  func.func @transform_1(%arg0: i32) -> (i32, i32) {
    %c0_i32 = arith.constant 0 : i32
    %c0_i32_0 = arith.constant 0 : i32
    %c0_i32_1 = arith.constant 0 : i32
    return %c0_i32, %c0_i32_0 : i32, i32
  }
  func.func @transform_2(%arg0: i32) -> (i32, i32) {
    %c0_i32 = arith.constant 0 : i32
    %c0_i32_0 = arith.constant 0 : i32
    %c0_i32_1 = arith.constant 0 : i32
    return %c0_i32, %c0_i32_0 : i32, i32
  }
  func.func @transform_3(%arg0: i32) -> (i32, i32) {
    %c0_i32 = arith.constant 0 : i32
    %c0_i32_0 = arith.constant 0 : i32
    %c0_i32_1 = arith.constant 0 : i32
    return %c0_i32, %c0_i32_0 : i32, i32
  }
  func.func @transform_4(%arg0: i32) -> (i32, i32) {
    %c0_i32 = arith.constant 0 : i32
    %c0_i32_0 = arith.constant 0 : i32
    %c0_i32_1 = arith.constant 0 : i32
    return %c0_i32, %c0_i32_0 : i32, i32
  }
  func.func @transform_5(%arg0: i32) -> (i32, i32) {
    %c0_i32 = arith.constant 0 : i32
    %c0_i32_0 = arith.constant 0 : i32
    %c0_i32_1 = arith.constant 0 : i32
    return %c0_i32, %c0_i32_0 : i32, i32
  }
  func.func @transform_6(%arg0: i32) -> (i32, i32) {
    %c0_i32 = arith.constant 0 : i32
    %c0_i32_0 = arith.constant 0 : i32
    %c0_i32_1 = arith.constant 0 : i32
    return %c0_i32, %c0_i32_0 : i32, i32
  }
  func.func @transform_7(%arg0: i32) -> (i32, i32) {
    %c0_i32 = arith.constant 0 : i32
    %c0_i32_0 = arith.constant 0 : i32
    %c0_i32_1 = arith.constant 0 : i32
    return %c0_i32, %c0_i32_0 : i32, i32
  }
  func.func @transform_8(%arg0: i32) -> (i32, i32) {
    %c0_i32 = arith.constant 0 : i32
    %c0_i32_0 = arith.constant 0 : i32
    %c0_i32_1 = arith.constant 0 : i32
    return %c0_i32, %c0_i32_0 : i32, i32
  }
  func.func @transform_9(%arg0: i32) -> (i32, i32) {
    %c0_i32 = arith.constant 0 : i32
    %c0_i32_0 = arith.constant 0 : i32
    return %arg0, %c0_i32 : i32, i32
  }
  func.func @transform_10(%arg0: i32) -> (i32, i32) {
    %c0_i32 = arith.constant 0 : i32
    %c0_i32_0 = arith.constant 0 : i32
    return %arg0, %c0_i32 : i32, i32
  }
}

</mosaic_0001>

<llo_original>
// kernel: tpu_custom_call.1
$region0: #{tpu_custom_call.1}
  #allocation0 [shape = 'u32[]', space=smem, size = 0x4, offset = 0x4, fixed_abs, tag = 'smem constant byte address 0x4 - core index']
  #allocation1 [shape = 'u32[72,128]{1,0:T(1,128)}', space=vmem, size = 0x9000, scoped, tag = 'internal scratch']
  %s0 = inlined_call_operand.hbm [shape: bf16[8,128], index: 0, kind: input, shape index: {}]
  %s1 = inlined_call_operand.hbm [shape: bf16[128,128], index: 1, kind: input, shape index: {}]
  %s2 = inlined_call_operand.vmem [shape: f32[1,128], index: 2, kind: input, shape index: {}]
  %s3 = inlined_call_operand.hbm [shape: bf16[128,128], index: 3, kind: input, shape index: {}]
  %s4 = inlined_call_operand.vmem [shape: f32[1,128], index: 4, kind: input, shape index: {}]
  %s5 = inlined_call_operand.hbm [shape: bf16[128,128], index: 5, kind: input, shape index: {}]
  %s6 = inlined_call_operand.vmem [shape: f32[1,128], index: 6, kind: input, shape index: {}]
  %s7 = inlined_call_operand.hbm [shape: bf16[128,128], index: 7, kind: input, shape index: {}]
  %s8 = inlined_call_operand.vmem [shape: f32[1,128], index: 8, kind: input, shape index: {}]
  %s9 = inlined_call_operand.hbm [shape: bf16[8,128], index: 9, kind: output, shape index: {0}]
  %s10 = inlined_call_operand.hbm [shape: bf16[8,128], index: 10, kind: output, shape index: {1}]
  %11 = xla_tuple %s9, %s10
  %s12 = sld [smem:[#allocation0]]
  $region74: #{tpu_custom_call.1} parent=0
    _
  %s14 = ssub.s32 1, %s12
  %s15 = scalar_select 0, %s14, %s12
  $region1: #{tpu_custom_call.1} parent=0
    #allocation2 [shape = 'u8[2048]{0}', space=vmem, size = 0x800, scoped, tag = 'input window, operand 0, single buffered']
    #allocation3 [shape = 's32[1]{0}', space=sflag, size = 0x4, scoped, tag = 'scoped memory for tpu_custom_call.1']
    #allocation4 [shape = 's32[1]{0}', space=sflag, size = 0x4, scoped, tag = 'scoped memory for tpu_custom_call.1']
    #allocation5 [shape = 'u8[32768]{0}', space=vmem, size = 0x8000, scoped, tag = 'input window, operand 1, single buffered']
    #allocation6 [shape = 's32[1]{0}', space=sflag, size = 0x4, scoped, tag = 'scoped memory for tpu_custom_call.1']
    #allocation7 [shape = 'u8[32768]{0}', space=vmem, size = 0x8000, scoped, tag = 'input window, operand 3, single buffered']
    #allocation8 [shape = 'u8[32768]{0}', space=vmem, size = 0x8000, scoped, tag = 'input window, operand 5, single buffered']
    #allocation9 [shape = 's32[1]{0}', space=sflag, size = 0x4, scoped, tag = 'scoped memory for tpu_custom_call.1']
    #allocation10 [shape = 'u8[32768]{0}', space=vmem, size = 0x8000, scoped, tag = 'input window, operand 7, single buffered']
    #allocation11 [shape = 'u8[2048]{0}', space=vmem, size = 0x800, scoped, tag = 'output window, operand 0, single buffered']
    #allocation12 [shape = 'u8[2048]{0}', space=vmem, size = 0x800, scoped, tag = 'output window, operand 1, single buffered']
    #allocation13 [shape = 's32[1]{0}', space=sflag, size = 0x4, scoped, tag = 'scoped memory for tpu_custom_call.1']
    %16 = vsyncpa [#allocation3], 0
    %17 = vsyncpa [#allocation6], 0
    %18 = vsyncpa [#allocation9], 0
    %19 = vsyncpa [#allocation4], 0
    %20 = vsyncpa [#allocation13], 0
    // Predicated region
    $region2: #{tpu_custom_call.1} parent=1 // pred_check
      _
    $region3: #{tpu_custom_call.1} parent=1 // pred_check_branch
      %22 = sbr.rel (0) target = $region5
    $region4: #{tpu_custom_call.1} parent=1 // pred_region
      %24 = vsyncadd [#allocation3], 0
      %s26 = sshll.u32 %s0, 4
      %s27 = int_to_ptr.hbm [resolvable:$true] %s26
      %s28 = sshll.u32 [#allocation2], 4
      %s29 = int_to_ptr.vmem [resolvable:$true] %s28
      %31 = dma.hbm_to_vmem [thread:$0]  %s27, 64, %s29, [#allocation3]
    $region5: #{tpu_custom_call.1} parent=1 // pred_fallthru
      _
    // Predicated region
    $region6: #{tpu_custom_call.1} parent=1 // pred_check
      _
    $region7: #{tpu_custom_call.1} parent=1 // pred_check_branch
      %33 = sbr.rel (0) target = $region9
    $region8: #{tpu_custom_call.1} parent=1 // pred_region
      %35 = vsyncadd [#allocation6], 0
      %s36 = sshll.u32 %s1, 4
      %s37 = int_to_ptr.hbm [resolvable:$true] %s36
      %s38 = sshll.u32 [#allocation5], 4
      %s39 = int_to_ptr.vmem [resolvable:$true] %s38
      %44 = dma.hbm_to_vmem [thread:$0]  %s37, 1024, %s39, [#allocation6], 64, 64, 4
    $region9: #{tpu_custom_call.1} parent=1 // pred_fallthru
      _
    // Predicated region
    $region10: #{tpu_custom_call.1} parent=1 // pred_check
      _
    $region11: #{tpu_custom_call.1} parent=1 // pred_check_branch
      %46 = sbr.rel (0) target = $region13
    $region12: #{tpu_custom_call.1} parent=1 // pred_region
      _
    $region13: #{tpu_custom_call.1} parent=1 // pred_fallthru
      _
    // Predicated region
    $region14: #{tpu_custom_call.1} parent=1 // pred_check
      _
    $region15: #{tpu_custom_call.1} parent=1 // pred_check_branch
      %48 = sbr.rel (0) target = $region17
    $region16: #{tpu_custom_call.1} parent=1 // pred_region
      %50 = vsyncadd [#allocation6], 0
      %s51 = sshll.u32 %s3, 4
      %s52 = int_to_ptr.hbm [resolvable:$true] %s51
      %s53 = sshll.u32 [#allocation7], 4
      %s54 = int_to_ptr.vmem [resolvable:$true] %s53
      %59 = dma.hbm_to_vmem [thread:$0]  %s52, 1024, %s54, [#allocation6], 64, 64, 4
    $region17: #{tpu_custom_call.1} parent=1 // pred_fallthru
      _
    // Predicated region
    $region18: #{tpu_custom_call.1} parent=1 // pred_check
      _
    $region19: #{tpu_custom_call.1} parent=1 // pred_check_branch
      %61 = sbr.rel (0) target = $region21
    $region20: #{tpu_custom_call.1} parent=1 // pred_region
      _
    $region21: #{tpu_custom_call.1} parent=1 // pred_fallthru
      _
    // Predicated region
    $region22: #{tpu_custom_call.1} parent=1 // pred_check
      _
    $region23: #{tpu_custom_call.1} parent=1 // pred_check_branch
      %63 = sbr.rel (0) target = $region25
    $region24: #{tpu_custom_call.1} parent=1 // pred_region
      %65 = vsyncadd [#allocation9], 0
      %s66 = sshll.u32 %s5, 4
      %s67 = int_to_ptr.hbm [resolvable:$true] %s66
      %s68 = sshll.u32 [#allocation8], 4
      %s69 = int_to_ptr.vmem [resolvable:$true] %s68
      %74 = dma.hbm_to_vmem [thread:$0]  %s67, 1024, %s69, [#allocation9], 64, 64, 4
    $region25: #{tpu_custom_call.1} parent=1 // pred_fallthru
      _
    // Predicated region
    $region26: #{tpu_custom_call.1} parent=1 // pred_check
      _
    $region27: #{tpu_custom_call.1} parent=1 // pred_check_branch
      %76 = sbr.rel (0) target = $region29
    $region28: #{tpu_custom_call.1} parent=1 // pred_region
      _
    $region29: #{tpu_custom_call.1} parent=1 // pred_fallthru
      _
    // Predicated region
    $region30: #{tpu_custom_call.1} parent=1 // pred_check
      _
    $region31: #{tpu_custom_call.1} parent=1 // pred_check_branch
      %78 = sbr.rel (0) target = $region33
    $region32: #{tpu_custom_call.1} parent=1 // pred_region
      %80 = vsyncadd [#allocation9], 0
      %s81 = sshll.u32 %s7, 4
      %s82 = int_to_ptr.hbm [resolvable:$true] %s81
      %s83 = sshll.u32 [#allocation10], 4
      %s84 = int_to_ptr.vmem [resolvable:$true] %s83
      %89 = dma.hbm_to_vmem [thread:$0]  %s82, 1024, %s84, [#allocation9], 64, 64, 4
    $region33: #{tpu_custom_call.1} parent=1 // pred_fallthru
      _
    // Predicated region
    $region34: #{tpu_custom_call.1} parent=1 // pred_check
      _
    $region35: #{tpu_custom_call.1} parent=1 // pred_check_branch
      %91 = sbr.rel (0) target = $region37
    $region36: #{tpu_custom_call.1} parent=1 // pred_region
      _
    $region37: #{tpu_custom_call.1} parent=1 // pred_fallthru
      _
    // Predicated region
    $region38: #{tpu_custom_call.1} parent=1 // pred_check
      _
    $region39: #{tpu_custom_call.1} parent=1 // pred_check_branch
      %93 = sbr.rel (0) target = $region41
    $region40: #{tpu_custom_call.1} parent=1 // pred_region
      %95 = dma.done [#allocation3], 64
    $region41: #{tpu_custom_call.1} parent=1 // pred_fallthru
      _
    // Predicated region
    $region42: #{tpu_custom_call.1} parent=1 // pred_check
      _
    $region43: #{tpu_custom_call.1} parent=1 // pred_check_branch
      %97 = sbr.rel (0) target = $region45
    $region44: #{tpu_custom_call.1} parent=1 // pred_region
      %99 = dma.done [#allocation6], 1024
    $region45: #{tpu_custom_call.1} parent=1 // pred_fallthru
      _
    // Predicated region
    $region46: #{tpu_custom_call.1} parent=1 // pred_check
      _
    $region47: #{tpu_custom_call.1} parent=1 // pred_check_branch
      %101 = sbr.rel (0) target = $region49
    $region48: #{tpu_custom_call.1} parent=1 // pred_region
      %103 = dma.done [#allocation6], 1024
    $region49: #{tpu_custom_call.1} parent=1 // pred_fallthru
      _
    // Predicated region
    $region50: #{tpu_custom_call.1} parent=1 // pred_check
      _
    $region51: #{tpu_custom_call.1} parent=1 // pred_check_branch
      %105 = sbr.rel (0) target = $region53
    $region52: #{tpu_custom_call.1} parent=1 // pred_region
      %107 = dma.done [#allocation9], 1024
    $region53: #{tpu_custom_call.1} parent=1 // pred_fallthru
      _
    // Predicated region
    $region54: #{tpu_custom_call.1} parent=1 // pred_check
      _
    $region55: #{tpu_custom_call.1} parent=1 // pred_check_branch
      %109 = sbr.rel (0) target = $region57
    $region56: #{tpu_custom_call.1} parent=1 // pred_region
      %111 = dma.done [#allocation9], 1024
    $region57: #{tpu_custom_call.1} parent=1 // pred_fallthru
      _
    %v112 = vld [vmem:[#allocation2] sm:$0xf]
    %v113 = vld [vmem:[#allocation5] sm:$0xf]
    %v114 = vld [vmem:[#allocation5 + $0x4] sm:$0xf]
    %v115 = vld [vmem:[#allocation5 + $0x8] sm:$0xf]
    %v116 = vld [vmem:[#allocation5 + $0xc] sm:$0xf]
    %v117 = vld [vmem:[#allocation5 + $0x10] sm:$0xf]
    %v118 = vld [vmem:[#allocation5 + $0x14] sm:$0xf]
    %v119 = vld [vmem:[#allocation5 + $0x18] sm:$0xf]
    %v120 = vld [vmem:[#allocation5 + $0x1c] sm:$0xf]
    %v121 = vld [vmem:[#allocation5 + $0x20] sm:$0xf]
    %v122 = vld [vmem:[#allocation5 + $0x24] sm:$0xf]
    %v123 = vld [vmem:[#allocation5 + $0x28] sm:$0xf]
    %v124 = vld [vmem:[#allocation5 + $0x2c] sm:$0xf]
    %v125 = vld [vmem:[#allocation5 + $0x30] sm:$0xf]
    %v126 = vld [vmem:[#allocation5 + $0x34] sm:$0xf]
    %v127 = vld [vmem:[#allocation5 + $0x38] sm:$0xf]
    %v128 = vld [vmem:[#allocation5 + $0x3c] sm:$0xf]
    %v129 = vld [vmem:[%s2] sm:$0x1]
    %v131 = vperm.slane %v129, 0
    %v149 = vunpack.c.l.b16 %v113
    %v150 = vunpack.c.l.b16 %v114
    %v151 = vunpack.c.l.b16 %v115
    %v152 = vunpack.c.l.b16 %v116
    %v153 = vunpack.c.l.b16 %v117
    %v154 = vunpack.c.l.b16 %v118
    %v155 = vunpack.c.l.b16 %v119
    %v156 = vunpack.c.l.b16 %v120
    %v157 = vunpack.c.l.b16 %v121
    %v158 = vunpack.c.l.b16 %v122
    %v159 = vunpack.c.l.b16 %v123
    %v160 = vunpack.c.l.b16 %v124
    %v161 = vunpack.c.l.b16 %v125
    %v162 = vunpack.c.l.b16 %v126
    %v163 = vunpack.c.l.b16 %v127
    %v164 = vunpack.c.l.b16 %v128
    %v165 = vpack.c.b16 %v150, %v149
    %v166 = vpack.c.b16 %v152, %v151
    %v167 = vpack.c.b16 %v154, %v153
    %v168 = vpack.c.b16 %v156, %v155
    %v169 = vpack.c.b16 %v158, %v157
    %v170 = vpack.c.b16 %v160, %v159
    %v171 = vpack.c.b16 %v162, %v161
    %v172 = vpack.c.b16 %v164, %v163
    %181 = vmatpush.bf16.msra.mxu0 %v172
    %182 = vmatpush.bf16.msra.mxu0 %v171
    %183 = vmatpush.bf16.msra.mxu0 %v170
    %184 = vmatpush.bf16.msra.mxu0 %v169
    %185 = vmatpush.bf16.msra.mxu0 %v168
    %186 = vmatpush.bf16.msra.mxu0 %v167
    %187 = vmatpush.bf16.msra.mxu0 %v166
    %188 = vmatpush.bf16.msra.mxu0 %v165
    %189 = vmatmul.bf16.gmra.mxu0 %v112
    %v190 = vpop.f32.mrf.mxu0
    %v191 = vadd.f32 %v131, %v190
    %v192 = vpop.f32.mrf.mxu0
    %193 = vdwg.mxu0
    %v194 = vmax.f32 %v191, 0.0
    %v195 = vpack.c.bf16 %v194, %v194
    %v196 = vld [vmem:[#allocation7] sm:$0xf]
    %v197 = vld [vmem:[#allocation7 + $0x4] sm:$0xf]
    %v198 = vld [vmem:[#allocation7 + $0x8] sm:$0xf]
    %v199 = vld [vmem:[#allocation7 + $0xc] sm:$0xf]
    %v200 = vld [vmem:[#allocation7 + $0x10] sm:$0xf]
    %v201 = vld [vmem:[#allocation7 + $0x14] sm:$0xf]
    %v202 = vld [vmem:[#allocation7 + $0x18] sm:$0xf]
    %v203 = vld [vmem:[#allocation7 + $0x1c] sm:$0xf]
    %v204 = vld [vmem:[#allocation7 + $0x20] sm:$0xf]
    %v205 = vld [vmem:[#allocation7 + $0x24] sm:$0xf]
    %v206 = vld [vmem:[#allocation7 + $0x28] sm:$0xf]
    %v207 = vld [vmem:[#allocation7 + $0x2c] sm:$0xf]
    %v208 = vld [vmem:[#allocation7 + $0x30] sm:$0xf]
    %v209 = vld [vmem:[#allocation7 + $0x34] sm:$0xf]
    %v210 = vld [vmem:[#allocation7 + $0x38] sm:$0xf]
    %v211 = vld [vmem:[#allocation7 + $0x3c] sm:$0xf]
    %v212 = vld [vmem:[%s4] sm:$0x1]
    %v214 = vperm.slane %v212, 0
    %v232 = vunpack.c.l.b16 %v196
    %v233 = vunpack.c.l.b16 %v197
    %v234 = vunpack.c.l.b16 %v198
    %v235 = vunpack.c.l.b16 %v199
    %v236 = vunpack.c.l.b16 %v200
    %v237 = vunpack.c.l.b16 %v201
    %v238 = vunpack.c.l.b16 %v202
    %v239 = vunpack.c.l.b16 %v203
    %v240 = vunpack.c.l.b16 %v204
    %v241 = vunpack.c.l.b16 %v205
    %v242 = vunpack.c.l.b16 %v206
    %v243 = vunpack.c.l.b16 %v207
    %v244 = vunpack.c.l.b16 %v208
    %v245 = vunpack.c.l.b16 %v209
    %v246 = vunpack.c.l.b16 %v210
    %v247 = vunpack.c.l.b16 %v211
    %v248 = vpack.c.b16 %v233, %v232
    %v249 = vpack.c.b16 %v235, %v234
    %v250 = vpack.c.b16 %v237, %v236
    %v251 = vpack.c.b16 %v239, %v238
    %v252 = vpack.c.b16 %v241, %v240
    %v253 = vpack.c.b16 %v243, %v242
    %v254 = vpack.c.b16 %v245, %v244
    %v255 = vpack.c.b16 %v247, %v246
    %264 = vmatpush.bf16.msra.mxu0 %v255
    %265 = vmatpush.bf16.msra.mxu0 %v254
    %266 = vmatpush.bf16.msra.mxu0 %v253
    %267 = vmatpush.bf16.msra.mxu0 %v252
    %268 = vmatpush.bf16.msra.mxu0 %v251
    %269 = vmatpush.bf16.msra.mxu0 %v250
    %270 = vmatpush.bf16.msra.mxu0 %v249
    %271 = vmatpush.bf16.msra.mxu0 %v248
    %272 = vmatmul.bf16.gmra.mxu0 %v195
    %v273 = vpop.f32.mrf.mxu0
    %v274 = vadd.f32 %v214, %v273
    %v275 = vpop.f32.mrf.mxu0
    %276 = vdwg.mxu0
    %v277 = vmax.f32 %v274, 0.0
    %v278 = vpack.c.bf16 %v277, %v277
    %v279 = vld [vmem:[#allocation8] sm:$0xf]
    %v280 = vld [vmem:[#allocation8 + $0x4] sm:$0xf]
    %v281 = vld [vmem:[#allocation8 + $0x8] sm:$0xf]
    %v282 = vld [vmem:[#allocation8 + $0xc] sm:$0xf]
    %v283 = vld [vmem:[#allocation8 + $0x10] sm:$0xf]
    %v284 = vld [vmem:[#allocation8 + $0x14] sm:$0xf]
    %v285 = vld [vmem:[#allocation8 + $0x18] sm:$0xf]
    %v286 = vld [vmem:[#allocation8 + $0x1c] sm:$0xf]
    %v287 = vld [vmem:[#allocation8 + $0x20] sm:$0xf]
    %v288 = vld [vmem:[#allocation8 + $0x24] sm:$0xf]
    %v289 = vld [vmem:[#allocation8 + $0x28] sm:$0xf]
    %v290 = vld [vmem:[#allocation8 + $0x2c] sm:$0xf]
    %v291 = vld [vmem:[#allocation8 + $0x30] sm:$0xf]
    %v292 = vld [vmem:[#allocation8 + $0x34] sm:$0xf]
    %v293 = vld [vmem:[#allocation8 + $0x38] sm:$0xf]
    %v294 = vld [vmem:[#allocation8 + $0x3c] sm:$0xf]
    %v295 = vld [vmem:[%s6] sm:$0x1]
    %v297 = vperm.slane %v295, 0
    %v315 = vunpack.c.l.b16 %v279
    %v316 = vunpack.c.l.b16 %v280
    %v317 = vunpack.c.l.b16 %v281
    %v318 = vunpack.c.l.b16 %v282
    %v319 = vunpack.c.l.b16 %v283
    %v320 = vunpack.c.l.b16 %v284
    %v321 = vunpack.c.l.b16 %v285
    %v322 = vunpack.c.l.b16 %v286
    %v323 = vunpack.c.l.b16 %v287
    %v324 = vunpack.c.l.b16 %v288
    %v325 = vunpack.c.l.b16 %v289
    %v326 = vunpack.c.l.b16 %v290
    %v327 = vunpack.c.l.b16 %v291
    %v328 = vunpack.c.l.b16 %v292
    %v329 = vunpack.c.l.b16 %v293
    %v330 = vunpack.c.l.b16 %v294
    %v331 = vpack.c.b16 %v316, %v315
    %v332 = vpack.c.b16 %v318, %v317
    %v333 = vpack.c.b16 %v320, %v319
    %v334 = vpack.c.b16 %v322, %v321
    %v335 = vpack.c.b16 %v324, %v323
    %v336 = vpack.c.b16 %v326, %v325
    %v337 = vpack.c.b16 %v328, %v327
    %v338 = vpack.c.b16 %v330, %v329
    %347 = vmatpush.bf16.msra.mxu0 %v338
    %348 = vmatpush.bf16.msra.mxu0 %v337
    %349 = vmatpush.bf16.msra.mxu0 %v336
    %350 = vmatpush.bf16.msra.mxu0 %v335
    %351 = vmatpush.bf16.msra.mxu0 %v334
    %352 = vmatpush.bf16.msra.mxu0 %v333
    %353 = vmatpush.bf16.msra.mxu0 %v332
    %354 = vmatpush.bf16.msra.mxu0 %v331
    %355 = vmatmul.bf16.gmra.mxu0 %v278
    %v356 = vpop.f32.mrf.mxu0
    %v357 = vadd.f32 %v297, %v356
    %v358 = vpop.f32.mrf.mxu0
    %359 = vdwg.mxu0
    %v360 = vmax.f32 %v357, 0.0
    %v361 = vpack.c.bf16 %v360, %v360
    %v362 = vld [vmem:[#allocation10] sm:$0xf]
    %v363 = vld [vmem:[#allocation10 + $0x4] sm:$0xf]
    %v364 = vld [vmem:[#allocation10 + $0x8] sm:$0xf]
    %v365 = vld [vmem:[#allocation10 + $0xc] sm:$0xf]
    %v366 = vld [vmem:[#allocation10 + $0x10] sm:$0xf]
    %v367 = vld [vmem:[#allocation10 + $0x14] sm:$0xf]
    %v368 = vld [vmem:[#allocation10 + $0x18] sm:$0xf]
    %v369 = vld [vmem:[#allocation10 + $0x1c] sm:$0xf]
    %v370 = vld [vmem:[#allocation10 + $0x20] sm:$0xf]
    %v371 = vld [vmem:[#allocation10 + $0x24] sm:$0xf]
    %v372 = vld [vmem:[#allocation10 + $0x28] sm:$0xf]
    %v373 = vld [vmem:[#allocation10 + $0x2c] sm:$0xf]
    %v374 = vld [vmem:[#allocation10 + $0x30] sm:$0xf]
    %v375 = vld [vmem:[#allocation10 + $0x34] sm:$0xf]
    %v376 = vld [vmem:[#allocation10 + $0x38] sm:$0xf]
    %v377 = vld [vmem:[#allocation10 + $0x3c] sm:$0xf]
    %v378 = vld [vmem:[%s8] sm:$0x1]
    %v380 = vperm.slane %v378, 0
    %v398 = vunpack.c.l.b16 %v362
    %v399 = vunpack.c.l.b16 %v363
    %v400 = vunpack.c.l.b16 %v364
    %v401 = vunpack.c.l.b16 %v365
    %v402 = vunpack.c.l.b16 %v366
    %v403 = vunpack.c.l.b16 %v367
    %v404 = vunpack.c.l.b16 %v368
    %v405 = vunpack.c.l.b16 %v369
    %v406 = vunpack.c.l.b16 %v370
    %v407 = vunpack.c.l.b16 %v371
    %v408 = vunpack.c.l.b16 %v372
    %v409 = vunpack.c.l.b16 %v373
    %v410 = vunpack.c.l.b16 %v374
    %v411 = vunpack.c.l.b16 %v375
    %v412 = vunpack.c.l.b16 %v376
    %v413 = vunpack.c.l.b16 %v377
    %v414 = vpack.c.b16 %v399, %v398
    %v415 = vpack.c.b16 %v401, %v400
    %v416 = vpack.c.b16 %v403, %v402
    %v417 = vpack.c.b16 %v405, %v404
    %v418 = vpack.c.b16 %v407, %v406
    %v419 = vpack.c.b16 %v409, %v408
    %v420 = vpack.c.b16 %v411, %v410
    %v421 = vpack.c.b16 %v413, %v412
    %430 = vmatpush.bf16.msra.mxu0 %v421
    %431 = vmatpush.bf16.msra.mxu0 %v420
    %432 = vmatpush.bf16.msra.mxu0 %v419
    %433 = vmatpush.bf16.msra.mxu0 %v418
    %434 = vmatpush.bf16.msra.mxu0 %v417
    %435 = vmatpush.bf16.msra.mxu0 %v416
    %436 = vmatpush.bf16.msra.mxu0 %v415
    %437 = vmatpush.bf16.msra.mxu0 %v414
    %438 = vmatmul.bf16.gmra.mxu0 %v361
    %v439 = vpop.f32.mrf.mxu0
    %v440 = vadd.f32 %v380, %v439
    %v441 = vpop.f32.mrf.mxu0
    %442 = vdwg.mxu0
    %v443 = vpack.c.bf16 %v440, %v440
    %444 = vst [vmem:[#allocation11] sm:$0xf] %v443
    %445 = vst [vmem:[#allocation12] sm:$0xf] %v361
    // Predicated region
    $region58: #{tpu_custom_call.1} parent=1 // pred_check
      _
    $region59: #{tpu_custom_call.1} parent=1 // pred_check_branch
      %447 = sbr.rel (0) target = $region61
    $region60: #{tpu_custom_call.1} parent=1 // pred_region
      %449 = vsyncadd [#allocation4], 0
      %s451 = sshll.u32 [#allocation11], 4
      %s452 = int_to_ptr.vmem [resolvable:$true] %s451
      %s453 = sshll.u32 %s9, 4
      %s454 = int_to_ptr.hbm [resolvable:$true] %s453
      %456 = dma.vmem_to_hbm [thread:$0]  %s452, 64, %s454, [#allocation4]
    $region61: #{tpu_custom_call.1} parent=1 // pred_fallthru
      _
    // Predicated region
    $region62: #{tpu_custom_call.1} parent=1 // pred_check
      _
    $region63: #{tpu_custom_call.1} parent=1 // pred_check_branch
      %458 = sbr.rel (0) target = $region65
    $region64: #{tpu_custom_call.1} parent=1 // pred_region
      %460 = vsyncadd [#allocation13], 0
      %s462 = sshll.u32 [#allocation12], 4
      %s463 = int_to_ptr.vmem [resolvable:$true] %s462
      %s464 = sshll.u32 %s10, 4
      %s465 = int_to_ptr.hbm [resolvable:$true] %s464
      %467 = dma.vmem_to_hbm [thread:$0]  %s463, 64, %s465, [#allocation13]
    $region65: #{tpu_custom_call.1} parent=1 // pred_fallthru
      _
    // Predicated region
    $region66: #{tpu_custom_call.1} parent=1 // pred_check
      _
    $region67: #{tpu_custom_call.1} parent=1 // pred_check_branch
      %469 = sbr.rel (0) target = $region69
    $region68: #{tpu_custom_call.1} parent=1 // pred_region
      %471 = dma.done [#allocation4], 64
    $region69: #{tpu_custom_call.1} parent=1 // pred_fallthru
      _
    // Predicated region
    $region70: #{tpu_custom_call.1} parent=1 // pred_check
      _
    $region71: #{tpu_custom_call.1} parent=1 // pred_check_branch
      %473 = sbr.rel (0) target = $region73
    $region72: #{tpu_custom_call.1} parent=1 // pred_region
      %475 = dma.done [#allocation13], 64
    $region73: #{tpu_custom_call.1} parent=1 // pred_fallthru
      _
    %476 = vsyncpa [#allocation3], 1
    %477 = vsyncpa [#allocation6], 1
    %478 = vsyncpa [#allocation9], 1
    %479 = vsyncpa [#allocation4], 1
    %480 = vsyncpa [#allocation13], 1

</llo_original>
